<compile_context>
chip_gen: v5e
topology: v5e:2x2
jax: 0.10.0
libtpu: 0.0.40
codegen_flags: <defaults>
</compile_context>

<pallas_src>
import jax
import jax.numpy as jnp
from jax.experimental import pallas as pl
from jax.experimental.pallas import tpu as pltpu


def _cdiv(a: int, b: int) -> int:
    return -(-a // b)


def _round_up(x: int, m: int) -> int:
    return ((x + m - 1) // m) * m


def linear_relu_kernel(w1_ref, b1_ref, x_ref, out_ref):
    """Fused Linear(10 -> 1) + ReLU on a sublane+lane-dense batch tile.

    w1_ref : SMEM (10,)        f32  weights of the first Linear (flattened)
    b1_ref : SMEM (1,)         f32  bias of the first Linear
    x_ref  : VMEM (10, 8, TB)  f32  input tile, feature-major, batch folded
                                    onto (8 sublanes x TB lanes)
    out_ref: VMEM (8, TB)      f32  dense output tile (same batch fold)
    """
    num_features = x_ref.shape[0]  # static == 10

    # Hoist the scalar SMEM reads ahead of the MAC chain.
    w = [w1_ref[k] for k in range(num_features)]

    # Two independent accumulator chains (even / odd k) expose ILP across the
    # VALU slots; each MAC operates on a full (8, TB) sublane+lane-dense tile.
    acc0 = jnp.full(out_ref.shape, b1_ref[0], dtype=jnp.float32)
    acc1 = jnp.zeros(out_ref.shape, dtype=jnp.float32)
    for k in range(0, num_features - 1, 2):
        acc0 = acc0 + w[k] * x_ref[k]
        acc1 = acc1 + w[k + 1] * x_ref[k + 1]
    if num_features % 2:
        acc0 = acc0 + w[num_features - 1] * x_ref[num_features - 1]

    out_ref[...] = jnp.maximum(acc0 + acc1, 0.0)  # ReLU

    # TODO(synk): layers 2 & 3 (nn.Linear(10, 1)) of the reference Sequential
    # are shape-inconsistent with the (B, 1) output above (they require 10
    # input features); the PyTorch forward would error, so they are not
    # executed here rather than faking semantics.


def neural_network_forward(x, params, *, tb_lane: int = 8192):
    """Equivalent of NeuralNetwork.forward for the valid portion of the stack.

    tb_lane: lane width of one batch tile.  Each grid step covers 8 * tb_lane
    batch elements; at the default 8192 that is ~2.5 MiB of input + 0.25 MiB of
    output per step, so with double buffering the VMEM working set is ~5.5 MiB
    -- far under the scoped-VMEM limit on v5e/v6e/v7x while large enough to hit
    the HBM roofline.
    """
    w1 = params["w1"]                       # (1, 10) PyTorch (out, in) layout
    b1 = params["b1"]                       # (1,)

    batch = x.shape[0]
    x_flat = x.reshape(batch, -1).astype(jnp.float32)   # nn.Flatten -> (B, 10)
    num_features = x_flat.shape[1]
    if num_features != 10:
        raise ValueError(
            f"Linear(10, 1) expects 10 input features after Flatten, "
            f"got {num_features}")

    # Batch fold: batch -> (8 sublanes, cols lanes).  cols is lane-aligned; keep
    # the grid >= 2 when there is enough work so the "parallel" axis can be
    # sharded across both v7x TensorCores (no effect on single-TC v5e/v6e).
    cols_min = _round_up(max(1, _cdiv(batch, 8)), 128)
    if cols_min >= 2 * 128:
        tb = min(tb_lane, _round_up(_cdiv(cols_min, 2), 128))
    else:
        tb = cols_min
    cols_pad = _round_up(cols_min, tb)
    b_pad = 8 * cols_pad

    # TODO(synk): producing activations in (features, batch) layout upstream
    # would remove this relayout entirely; here it is a single fused
    # pad+transpose copy (no separate zero-fill pass) plus a free row-major
    # reshape into the kernel's (10, 8, cols) layout.
    x_t = jnp.pad(x_flat.T, ((0, 0), (0, b_pad - batch)))
    x_t = x_t.reshape(num_features, 8, cols_pad)

    grid = (cols_pad // tb,)
    out_t = pl.pallas_call(
        linear_relu_kernel,
        out_shape=jax.ShapeDtypeStruct((8, cols_pad), jnp.float32),
        grid=grid,
        in_specs=[
            # Tiny weight/bias vectors live in SMEM (scalar path) -- no padded
            # (8,128) VMEM tile and no per-step vector DMA for 11 scalars.
            pl.BlockSpec(memory_space=pltpu.MemorySpace.SMEM),        # w1 (10,)
            pl.BlockSpec(memory_space=pltpu.MemorySpace.SMEM),        # b1 (1,)
            pl.BlockSpec((num_features, 8, tb), lambda i: (0, 0, i)),  # x tile
        ],
        out_specs=pl.BlockSpec((8, tb), lambda i: (0, i)),
        compiler_params=pltpu.CompilerParams(
            # Batch tiles are independent: shard across both v7x TensorCores.
            dimension_semantics=("parallel",),
            # Explicit scoped-VMEM budget: 2x(input+output) buffers stay well
            # under this even at tb_lane=8192, so the kernel is portable to
            # v7x's 64 MiB physical VMEM.
            vmem_limit_bytes=32 * 1024 * 1024),
    )(w1.reshape(num_features), b1.reshape(1), x_t)

    # Undo the row-major batch fold; drop padding; back to PyTorch-facing (B,1).
    return out_t.reshape(b_pad)[:batch].reshape(batch, 1)


def init_params(key):
    """Deterministic params for the three declared nn.Linear(10, 1) layers,
    mirroring PyTorch's U(-1/sqrt(fan_in), 1/sqrt(fan_in)) init."""
    ks = jax.random.split(key, 6)
    bound = 1.0 / jnp.sqrt(10.0)
    params = {}
    for idx, name in enumerate(("1", "2", "3")):
        params[f"w{name}"] = jax.random.uniform(
            ks[2 * idx], (1, 10), jnp.float32, -bound, bound)
        params[f"b{name}"] = jax.random.uniform(
            ks[2 * idx + 1], (1,), jnp.float32, -bound, bound)
    return params


if __name__ == "__main__":
    key = jax.random.PRNGKey(0)
    pkey, xkey1, xkey2 = jax.random.split(key, 3)
    params = init_params(pkey)

    def reference(xv):
        # Pure-JAX reference for the valid prefix: Flatten -> Linear(10,1) -> ReLU.
        xf = xv.reshape(xv.shape[0], -1)
        return jnp.maximum(xf @ params["w1"].T + params["b1"], 0.0)

    # Small input that Flatten maps to (B, 10): (8, 2, 5) -> (8, 10).
    x_small = jax.random.normal(xkey1, (8, 2, 5), dtype=jnp.float32)
    out_small = jax.block_until_ready(neural_network_forward(x_small, params))
    assert out_small.shape == (8, 1)
    assert bool(jnp.all(out_small >= 0.0))
    assert bool(jnp.allclose(out_small, reference(x_small), atol=1e-5, rtol=1e-5))

    # Larger batch exercising batch padding and a multi-step (grid >= 2) run.
    x_big = jax.random.normal(xkey2, (2051, 10), dtype=jnp.float32)
    out_big = jax.block_until_ready(neural_network_forward(x_big, params))
    assert out_big.shape == (2051, 1)
    assert bool(jnp.allclose(out_big, reference(x_big), atol=1e-5, rtol=1e-5))

    print("KERNEL_OK")
</pallas_src>

<mosaic_0001>
module attributes {stable_mosaic.version = 11 : i64} {
  func.func @linear_relu_kernel(%arg0: i32, %arg1: memref<10xf32, #tpu.memory_space<smem>>, %arg2: memref<1xf32, #tpu.memory_space<smem>>, %arg3: memref<10x8x128xf32, #tpu.memory_space<vmem>>, %arg4: memref<8x128xf32, #tpu.memory_space<vmem>>) attributes {dimension_semantics = [#tpu.dimension_semantics<parallel>], iteration_bounds = array<i64: 1>, scalar_prefetch = 0 : i64, scratch_operands = 0 : i64, tpu.core_type = #tpu.core_type<tc>, window_params = [{transform_indices = @transform_0, window_bounds = array<i64: 10>}, {transform_indices = @transform_1, window_bounds = array<i64: 1>}, {transform_indices = @transform_2, window_bounds = array<i64: 10, 8, 128>}, {transform_indices = @transform_3, window_bounds = array<i64: 8, 128>}]} {
    %c0 = arith.constant 0 : index
    %0 = memref.load %arg1[%c0] : memref<10xf32, #tpu.memory_space<smem>>
    %c1 = arith.constant 1 : index
    %1 = memref.load %arg1[%c1] : memref<10xf32, #tpu.memory_space<smem>>
    %c2 = arith.constant 2 : index
    %2 = memref.load %arg1[%c2] : memref<10xf32, #tpu.memory_space<smem>>
    %c3 = arith.constant 3 : index
    %3 = memref.load %arg1[%c3] : memref<10xf32, #tpu.memory_space<smem>>
    %c4 = arith.constant 4 : index
    %4 = memref.load %arg1[%c4] : memref<10xf32, #tpu.memory_space<smem>>
    %c5 = arith.constant 5 : index
    %5 = memref.load %arg1[%c5] : memref<10xf32, #tpu.memory_space<smem>>
    %c6 = arith.constant 6 : index
    %6 = memref.load %arg1[%c6] : memref<10xf32, #tpu.memory_space<smem>>
    %c7 = arith.constant 7 : index
    %7 = memref.load %arg1[%c7] : memref<10xf32, #tpu.memory_space<smem>>
    %c8 = arith.constant 8 : index
    %8 = memref.load %arg1[%c8] : memref<10xf32, #tpu.memory_space<smem>>
    %c9 = arith.constant 9 : index
    %9 = memref.load %arg1[%c9] : memref<10xf32, #tpu.memory_space<smem>>
    %c0_0 = arith.constant 0 : index
    %10 = memref.load %arg2[%c0_0] : memref<1xf32, #tpu.memory_space<smem>>
    %11 = vector.broadcast %10 : f32 to vector<8x128xf32>
    %cst = arith.constant 0.000000e+00 : f32
    %12 = vector.broadcast %cst : f32 to vector<8x128xf32>
    %c0_1 = arith.constant 0 : index
    %c0_2 = arith.constant 0 : index
    %c0_3 = arith.constant 0 : index
    %13 = vector.load %arg3[%c0_1, %c0_2, %c0_3] : memref<10x8x128xf32, #tpu.memory_space<vmem>>, vector<1x8x128xf32>
    %14 = vector.shape_cast %13 : vector<1x8x128xf32> to vector<8x128xf32>
    %15 = vector.broadcast %0 : f32 to vector<8x128xf32>
    %16 = arith.mulf %15, %14 : vector<8x128xf32>
    %17 = arith.addf %11, %16 : vector<8x128xf32>
    %c1_4 = arith.constant 1 : index
    %c0_5 = arith.constant 0 : index
    %c0_6 = arith.constant 0 : index
    %18 = vector.load %arg3[%c1_4, %c0_5, %c0_6] : memref<10x8x128xf32, #tpu.memory_space<vmem>>, vector<1x8x128xf32>
    %19 = vector.shape_cast %18 : vector<1x8x128xf32> to vector<8x128xf32>
    %20 = vector.broadcast %1 : f32 to vector<8x128xf32>
    %21 = arith.mulf %20, %19 : vector<8x128xf32>
    %22 = arith.addf %12, %21 : vector<8x128xf32>
    %c2_7 = arith.constant 2 : index
    %c0_8 = arith.constant 0 : index
    %c0_9 = arith.constant 0 : index
    %23 = vector.load %arg3[%c2_7, %c0_8, %c0_9] : memref<10x8x128xf32, #tpu.memory_space<vmem>>, vector<1x8x128xf32>
    %24 = vector.shape_cast %23 : vector<1x8x128xf32> to vector<8x128xf32>
    %25 = vector.broadcast %2 : f32 to vector<8x128xf32>
    %26 = arith.mulf %25, %24 : vector<8x128xf32>
    %27 = arith.addf %17, %26 : vector<8x128xf32>
    %c3_10 = arith.constant 3 : index
    %c0_11 = arith.constant 0 : index
    %c0_12 = arith.constant 0 : index
    %28 = vector.load %arg3[%c3_10, %c0_11, %c0_12] : memref<10x8x128xf32, #tpu.memory_space<vmem>>, vector<1x8x128xf32>
    %29 = vector.shape_cast %28 : vector<1x8x128xf32> to vector<8x128xf32>
    %30 = vector.broadcast %3 : f32 to vector<8x128xf32>
    %31 = arith.mulf %30, %29 : vector<8x128xf32>
    %32 = arith.addf %22, %31 : vector<8x128xf32>
    %c4_13 = arith.constant 4 : index
    %c0_14 = arith.constant 0 : index
    %c0_15 = arith.constant 0 : index
    %33 = vector.load %arg3[%c4_13, %c0_14, %c0_15] : memref<10x8x128xf32, #tpu.memory_space<vmem>>, vector<1x8x128xf32>
    %34 = vector.shape_cast %33 : vector<1x8x128xf32> to vector<8x128xf32>
    %35 = vector.broadcast %4 : f32 to vector<8x128xf32>
    %36 = arith.mulf %35, %34 : vector<8x128xf32>
    %37 = arith.addf %27, %36 : vector<8x128xf32>
    %c5_16 = arith.constant 5 : index
    %c0_17 = arith.constant 0 : index
    %c0_18 = arith.constant 0 : index
    %38 = vector.load %arg3[%c5_16, %c0_17, %c0_18] : memref<10x8x128xf32, #tpu.memory_space<vmem>>, vector<1x8x128xf32>
    %39 = vector.shape_cast %38 : vector<1x8x128xf32> to vector<8x128xf32>
    %40 = vector.broadcast %5 : f32 to vector<8x128xf32>
    %41 = arith.mulf %40, %39 : vector<8x128xf32>
    %42 = arith.addf %32, %41 : vector<8x128xf32>
    %c6_19 = arith.constant 6 : index
    %c0_20 = arith.constant 0 : index
    %c0_21 = arith.constant 0 : index
    %43 = vector.load %arg3[%c6_19, %c0_20, %c0_21] : memref<10x8x128xf32, #tpu.memory_space<vmem>>, vector<1x8x128xf32>
    %44 = vector.shape_cast %43 : vector<1x8x128xf32> to vector<8x128xf32>
    %45 = vector.broadcast %6 : f32 to vector<8x128xf32>
    %46 = arith.mulf %45, %44 : vector<8x128xf32>
    %47 = arith.addf %37, %46 : vector<8x128xf32>
    %c7_22 = arith.constant 7 : index
    %c0_23 = arith.constant 0 : index
    %c0_24 = arith.constant 0 : index
    %48 = vector.load %arg3[%c7_22, %c0_23, %c0_24] : memref<10x8x128xf32, #tpu.memory_space<vmem>>, vector<1x8x128xf32>
    %49 = vector.shape_cast %48 : vector<1x8x128xf32> to vector<8x128xf32>
    %50 = vector.broadcast %7 : f32 to vector<8x128xf32>
    %51 = arith.mulf %50, %49 : vector<8x128xf32>
    %52 = arith.addf %42, %51 : vector<8x128xf32>
    %c8_25 = arith.constant 8 : index
    %c0_26 = arith.constant 0 : index
    %c0_27 = arith.constant 0 : index
    %53 = vector.load %arg3[%c8_25, %c0_26, %c0_27] : memref<10x8x128xf32, #tpu.memory_space<vmem>>, vector<1x8x128xf32>
    %54 = vector.shape_cast %53 : vector<1x8x128xf32> to vector<8x128xf32>
    %55 = vector.broadcast %8 : f32 to vector<8x128xf32>
    %56 = arith.mulf %55, %54 : vector<8x128xf32>
    %57 = arith.addf %47, %56 : vector<8x128xf32>
    %c9_28 = arith.constant 9 : index
    %c0_29 = arith.constant 0 : index
    %c0_30 = arith.constant 0 : index
    %58 = vector.load %arg3[%c9_28, %c0_29, %c0_30] : memref<10x8x128xf32, #tpu.memory_space<vmem>>, vector<1x8x128xf32>
    %59 = vector.shape_cast %58 : vector<1x8x128xf32> to vector<8x128xf32>
    %60 = vector.broadcast %9 : f32 to vector<8x128xf32>
    %61 = arith.mulf %60, %59 : vector<8x128xf32>
    %62 = arith.addf %52, %61 : vector<8x128xf32>
    %63 = arith.addf %57, %62 : vector<8x128xf32>
    %cst_31 = arith.constant 0.000000e+00 : f32
    %64 = vector.broadcast %cst_31 : f32 to vector<8x128xf32>
    %65 = arith.maximumf %63, %64 : vector<8x128xf32>
    %c0_32 = arith.constant 0 : index
    %c0_33 = arith.constant 0 : index
    %66 = vector.load %arg4[%c0_32, %c0_33] : memref<8x128xf32, #tpu.memory_space<vmem>>, vector<8x128xf32>
    tpu.vector_store %arg4[%c0_32, %c0_33], %65 {strides = array<i32>} : memref<8x128xf32, #tpu.memory_space<vmem>>, vector<8x128xf32>,
    return
  }
  func.func @transform_0(%arg0: i32) -> i32 {
    %c0_i32 = arith.constant 0 : i32
    %c0_i32_0 = arith.constant 0 : i32
    return %c0_i32 : i32
  }
  func.func @transform_1(%arg0: i32) -> i32 {
    %c0_i32 = arith.constant 0 : i32
    %c0_i32_0 = arith.constant 0 : i32
    return %c0_i32 : i32
  }
  func.func @transform_2(%arg0: i32) -> (i32, i32, i32) {
    %c0_i32 = arith.constant 0 : i32
    %c0_i32_0 = arith.constant 0 : i32
    %c0_i32_1 = arith.constant 0 : i32
    return %c0_i32, %c0_i32_0, %arg0 : i32, i32, i32
  }
  func.func @transform_3(%arg0: i32) -> (i32, i32) {
    %c0_i32 = arith.constant 0 : i32
    %c0_i32_0 = arith.constant 0 : i32
    return %c0_i32, %arg0 : i32, i32
  }
}

</mosaic_0001>

<llo_original>
// kernel: tpu_custom_call.1
$region0: #{tpu_custom_call.1}
  #allocation0 [shape = 'u32[]', space=smem, size = 0x4, offset = 0x4, fixed_abs, tag = 'smem constant byte address 0x4 - core index']
  #allocation1 [shape = 'u32[72,128]{1,0:T(1,128)}', space=vmem, size = 0x9000, scoped, tag = 'internal scratch']
  #allocation2 [shape = 'f32[1]{0:T(128)S(6)}', space=smem, size = 0x200, scoped, tag = 'scoped memory for tpu_custom_call.1']
  %s0 = inlined_call_operand.vmem [shape: f32[10], index: 0, kind: input, shape index: {}]
  %s1 = inlined_call_operand.<no memory space> [shape: f32[1], index: 1, kind: input, shape index: {}]
  %s2 = inlined_call_operand.hbm [shape: f32[10,8,128], index: 2, kind: input, shape index: {}]
  %s3 = inlined_call_operand.hbm [shape: f32[8,128], index: 3, kind: output, shape index: {}]
  %s4 = sld [smem:[#allocation0]]
  $region30: #{tpu_custom_call.1} parent=0
    _
  %s6 = ssub.s32 1, %s4
  %s7 = scalar_select 0, %s6, %s4
  %8 = sst [smem:[#allocation2]] %s1
  $region1: #{tpu_custom_call.1} parent=0
    #allocation3 [shape = 'u8[512]{0}', space=smem, size = 0x200, scoped, tag = 'input window, operand 0, single buffered']
    #allocation4 [shape = 's32[1]{0}', space=sflag, size = 0x4, scoped, tag = 'scoped memory for tpu_custom_call.1']
    #allocation5 [shape = 's32[1]{0}', space=sflag, size = 0x4, scoped, tag = 'scoped memory for tpu_custom_call.1']
    #allocation6 [shape = 's32[1]{0}', space=sflag, size = 0x4, scoped, tag = 'scoped memory for tpu_custom_call.1']
    #allocation7 [shape = 'u8[40960]{0}', space=vmem, size = 0xa000, scoped, tag = 'input window, operand 2, single buffered']
    #allocation8 [shape = 'u8[4096]{0}', space=vmem, size = 0x1000, scoped, tag = 'output window, operand 0, single buffered']
    %9 = vsyncpa [#allocation6], 0
    %10 = vsyncpa [#allocation4], 0
    %11 = vsyncpa [#allocation5], 0
    // Predicated region
    $region2: #{tpu_custom_call.1} parent=1 // pred_check
      _
    $region3: #{tpu_custom_call.1} parent=1 // pred_check_branch
      %13 = sbr.rel (0) target = $region5
    $region4: #{tpu_custom_call.1} parent=1 // pred_region
      %15 = vsyncadd [#allocation6], 0
      %s17 = sshll.u32 %s0, 4
      %s18 = int_to_ptr.vmem [resolvable:$true] %s17
      %20 = dma.vmem_to_smem %s18, 16, [#allocation3], [#allocation6]
    $region5: #{tpu_custom_call.1} parent=1 // pred_fallthru
      _
    // Predicated region
    $region6: #{tpu_custom_call.1} parent=1 // pred_check
      _
    $region7: #{tpu_custom_call.1} parent=1 // pred_check_branch
      %22 = sbr.rel (0) target = $region9
    $region8: #{tpu_custom_call.1} parent=1 // pred_region
      _
    $region9: #{tpu_custom_call.1} parent=1 // pred_fallthru
      _
    // Predicated region
    $region10: #{tpu_custom_call.1} parent=1 // pred_check
      _
    $region11: #{tpu_custom_call.1} parent=1 // pred_check_branch
      %24 = sbr.rel (0) target = $region13
    $region12: #{tpu_custom_call.1} parent=1 // pred_region
      %26 = vsyncadd [#allocation4], 0
      %s27 = sshll.u32 %s2, 4
      %s28 = int_to_ptr.hbm [resolvable:$true] %s27
      %s29 = sshll.u32 [#allocation7], 4
      %s30 = int_to_ptr.vmem [resolvable:$true] %s29
      %35 = dma.hbm_to_vmem [thread:$0]  %s28, 1280, %s30, [#allocation4], 128, 128, 8
    $region13: #{tpu_custom_call.1} parent=1 // pred_fallthru
      _
    // Predicated region
    $region14: #{tpu_custom_call.1} parent=1 // pred_check
      _
    $region15: #{tpu_custom_call.1} parent=1 // pred_check_branch
      %37 = sbr.rel (0) target = $region17
    $region16: #{tpu_custom_call.1} parent=1 // pred_region
      %39 = dma.done [#allocation6], 16
    $region17: #{tpu_custom_call.1} parent=1 // pred_fallthru
      _
    // Predicated region
    $region18: #{tpu_custom_call.1} parent=1 // pred_check
      _
    $region19: #{tpu_custom_call.1} parent=1 // pred_check_branch
      %41 = sbr.rel (0) target = $region21
    $region20: #{tpu_custom_call.1} parent=1 // pred_region
      %43 = dma.done [#allocation4], 1280
    $region21: #{tpu_custom_call.1} parent=1 // pred_fallthru
      _
    %44 = sfence
    %s45 = sld [smem:[#allocation3]]
    %s46 = sld [smem:[#allocation3 + $0x1]]
    %s47 = sld [smem:[#allocation3 + $0x2]]
    %s48 = sld [smem:[#allocation3 + $0x3]]
    %s49 = sld [smem:[#allocation3 + $0x4]]
    %s50 = sld [smem:[#allocation3 + $0x5]]
    %s51 = sld [smem:[#allocation3 + $0x6]]
    %s52 = sld [smem:[#allocation3 + $0x7]]
    %s53 = sld [smem:[#allocation3 + $0x8]]
    %s54 = sld [smem:[#allocation3 + $0x9]]
    %s55 = sld [smem:[#allocation2]]
    %v56 = vstv %s55
    %v57 = vld [vmem:[#allocation7] sm:$0xff]
    %v58 = vstv %s45
    %v59 = vmul.f32 %v58, %v57
    %v60 = vadd.f32 %v56, %v59
    %s61 = scalar_lea.vmem [#allocation7], 8
    %v62 = vld [vmem:[%s61] sm:$0xff]
    %v63 = vstv %s46
    %v64 = vmul.f32 %v63, %v62
    %v65 = vadd.f32 %v64, 0.0
    %s66 = scalar_lea.vmem [#allocation7], 16
    %v67 = vld [vmem:[%s66] sm:$0xff]
    %v68 = vstv %s47
    %v69 = vmul.f32 %v68, %v67
    %v70 = vadd.f32 %v60, %v69
    %s71 = scalar_lea.vmem [#allocation7], 24
    %v72 = vld [vmem:[%s71] sm:$0xff]
    %v73 = vstv %s48
    %v74 = vmul.f32 %v73, %v72
    %v75 = vadd.f32 %v65, %v74
    %s76 = scalar_lea.vmem [#allocation7], 32
    %v77 = vld [vmem:[%s76] sm:$0xff]
    %v78 = vstv %s49
    %v79 = vmul.f32 %v78, %v77
    %v80 = vadd.f32 %v70, %v79
    %s81 = scalar_lea.vmem [#allocation7], 40
    %v82 = vld [vmem:[%s81] sm:$0xff]
    %v83 = vstv %s50
    %v84 = vmul.f32 %v83, %v82
    %v85 = vadd.f32 %v75, %v84
    %s86 = scalar_lea.vmem [#allocation7], 48
    %v87 = vld [vmem:[%s86] sm:$0xff]
    %v88 = vstv %s51
    %v89 = vmul.f32 %v88, %v87
    %v90 = vadd.f32 %v80, %v89
    %s91 = scalar_lea.vmem [#allocation7], 56
    %v92 = vld [vmem:[%s91] sm:$0xff]
    %v93 = vstv %s52
    %v94 = vmul.f32 %v93, %v92
    %v95 = vadd.f32 %v85, %v94
    %s96 = scalar_lea.vmem [#allocation7], 64
    %v97 = vld [vmem:[%s96] sm:$0xff]
    %v98 = vstv %s53
    %v99 = vmul.f32 %v98, %v97
    %v100 = vadd.f32 %v90, %v99
    %s101 = scalar_lea.vmem [#allocation7], 72
    %v102 = vld [vmem:[%s101] sm:$0xff]
    %v103 = vstv %s54
    %v104 = vmul.f32 %v103, %v102
    %v105 = vadd.f32 %v95, %v104
    %v106 = vadd.f32 %v100, %v105
    %v107 = vmax.f32 %v106, 0.0
    %108 = vst [vmem:[#allocation8] sm:$0xff] %v107
    // Predicated region
    $region22: #{tpu_custom_call.1} parent=1 // pred_check
      _
    $region23: #{tpu_custom_call.1} parent=1 // pred_check_branch
      %110 = sbr.rel (0) target = $region25
    $region24: #{tpu_custom_call.1} parent=1 // pred_region
      %112 = vsyncadd [#allocation5], 0
      %s114 = sshll.u32 [#allocation8], 4
      %s115 = int_to_ptr.vmem [resolvable:$true] %s114
      %s116 = sshll.u32 %s3, 4
      %s117 = int_to_ptr.hbm [resolvable:$true] %s116
      %119 = dma.vmem_to_hbm [thread:$0]  %s115, 128, %s117, [#allocation5]
    $region25: #{tpu_custom_call.1} parent=1 // pred_fallthru
      _
    // Predicated region
    $region26: #{tpu_custom_call.1} parent=1 // pred_check
      _
    $region27: #{tpu_custom_call.1} parent=1 // pred_check_branch
      %121 = sbr.rel (0) target = $region29
    $region28: #{tpu_custom_call.1} parent=1 // pred_region
      %123 = dma.done [#allocation5], 128
    $region29: #{tpu_custom_call.1} parent=1 // pred_fallthru
      _
    %124 = vsyncpa [#allocation4], 1
    %125 = vsyncpa [#allocation5], 1
    %126 = vsyncpa [#allocation6], 1

</llo_original>
